<compile_context>
chip_gen: v7x
topology: tpu7x:2x2x1
jax: 0.10.0
libtpu: 0.0.40
codegen_flags: <defaults>
</compile_context>

<pallas_src>
import jax
import jax.numpy as jnp
from jax.experimental import pallas as pl
from jax.experimental.pallas import tpu as pltpu


def _mish_kernel(x_ref, o_ref):
    # Elementwise hot path: compute in f32 for accuracy, cast back at the end.
    # With u = exp(-|x|) (overflow-safe):
    #   tanh(softplus(x)) = (1 + 2u) / (1 + 2u + 2u^2)    for x >= 0
    #                     = (u^2 + 2u) / (u^2 + 2u + 2)    for x <  0
    # -> one exp plus one approximate reciprocal per element, both on the EUP.
    x = x_ref[...].astype(jnp.float32)
    u = jnp.exp(-jnp.abs(x))                # EUP transcendental #1
    u2 = u * u
    two_u = u + u
    pos = x >= 0.0
    a = jnp.where(pos, 1.0, u2)
    b = jnp.where(pos, u2, 1.0)
    num = a + two_u                         # 1 + 2u         (x>=0) | u^2 + 2u (x<0)
    den = num + (b + b)                     # 1 + 2u + 2u^2  (x>=0) | u^2 + 2u + 2
    inv = pl.reciprocal(den, approx=True)   # EUP transcendental #2 (off the VALU)
    o_ref[...] = (x * (num * inv)).astype(o_ref.dtype)


_LANE_WIDTHS = (2048, 1024, 512, 256, 128)


def _mish_small_jnp(x):
    # Plain-JAX path for the tiny (< one lane-row) ragged tail.
    xf = x.astype(jnp.float32)
    return (xf * jnp.tanh(jax.nn.softplus(xf))).astype(x.dtype)


def _run_mish_2d(x2d, *, target_block_bytes):
    rows, lanes = x2d.shape
    dtype = x2d.dtype
    itemsize = jnp.dtype(dtype).itemsize
    # Sublane packing: 8 rows (f32), 16 (bf16), 32 (int8/fp8).
    min_rows = max(8, 32 // max(itemsize, 1))
    row_bytes = lanes * itemsize
    total_bytes = rows * row_bytes

    # ~target_block_bytes per block, rounded down to the sublane packing.
    block_rows = max(min_rows,
                     (target_block_bytes // row_bytes) // min_rows * min_rows)

    if rows <= block_rows:
        if total_bytes > (2 << 20) and rows >= 2 * min_rows:
            # Keep >= 2 grid steps so both v7x TensorCores get work.
            block_rows = pl.cdiv(pl.cdiv(rows, 2), min_rows) * min_rows
        else:
            block_rows = rows  # full-dim block: always layout-legal
    else:
        steps = pl.cdiv(rows, block_rows)
        if steps % 2 == 1 and total_bytes > (2 << 20):
            # Prefer an even step count: balanced split across 2 TensorCores.
            block_rows = max(
                min_rows,
                pl.cdiv(pl.cdiv(rows, steps + 1), min_rows) * min_rows)

    grid = (pl.cdiv(rows, block_rows),)

    total = rows * lanes
    cost = pl.CostEstimate(
        flops=12 * total,
        transcendentals=2 * total,              # exp + approx reciprocal
        bytes_accessed=2 * total * itemsize,
    )

    return pl.pallas_call(
        _mish_kernel,
        out_shape=jax.ShapeDtypeStruct((rows, lanes), dtype),
        grid_spec=pltpu.PrefetchScalarGridSpec(
            num_scalar_prefetch=0,
            grid=grid,
            in_specs=[pl.BlockSpec((block_rows, lanes), lambda i: (i, 0))],
            out_specs=pl.BlockSpec((block_rows, lanes), lambda i: (i, 0)),
        ),
        compiler_params=pltpu.CompilerParams(
            dimension_semantics=("parallel",),
            # Raise v5e's 16 MiB default scoped VMEM; matches the v6e/v7x
            # defaults, and the 4x-block pipelined footprint fits with headroom.
            vmem_limit_bytes=32 << 20,
        ),
        cost_estimate=cost,
    )(x2d)


def mish(x, *, target_block_bytes=3 << 20):
    """Apply Mish elementwise to an arbitrary-shaped array via a Pallas kernel."""
    orig_shape = x.shape
    total = int(x.size)
    if total == 0:
        return x

    # Pick a wide lane-dense slab width that divides the element count so the
    # common (conv/transformer-sized) case needs no padding or extra copies.
    lanes = None
    for w in _LANE_WIDTHS:
        if total % w == 0:
            lanes = w
            break

    flat = jnp.reshape(x, (-1,))

    if lanes is not None:
        out2d = _run_mish_2d(jnp.reshape(flat, (total // lanes, lanes)),
                             target_block_bytes=target_block_bytes)
        return jnp.reshape(out2d, orig_shape)

    # Ragged size: run the kernel over the lane-aligned bulk and handle the
    # (< lanes) tail in plain jnp -- no whole-array pad/slice round trips.
    lanes = 1024 if total >= 1024 else 128
    bulk = (total // lanes) * lanes
    if bulk == 0:
        return jnp.reshape(_mish_small_jnp(flat), orig_shape)
    bulk_out = _run_mish_2d(jnp.reshape(flat[:bulk], (bulk // lanes, lanes)),
                            target_block_bytes=target_block_bytes)
    tail_out = _mish_small_jnp(flat[bulk:])
    out_flat = jnp.concatenate([jnp.reshape(bulk_out, (-1,)), tail_out])
    return jnp.reshape(out_flat, orig_shape)


def mish_reference(x):
    # Pure-JAX reference matching PyTorch semantics: x * tanh(softplus(x)).
    return x * jnp.tanh(jax.nn.softplus(x))


if __name__ == "__main__":
    key = jax.random.PRNGKey(0)

    # NCHW input like the PyTorch module would receive from a conv stack.
    x = jax.random.normal(key, (2, 4, 16, 16), dtype=jnp.float32) * 3.0
    y = jax.block_until_ready(mish(x))
    y_ref = mish_reference(x)
    assert y.shape == x.shape and y.dtype == x.dtype
    # approx=True reciprocal -> slightly looser tolerance than exact divide.
    assert jnp.allclose(y, y_ref, atol=5e-3, rtol=5e-3)

    # Ragged size, all-tail path (< 128 elements -> plain jnp).
    x2 = jax.random.normal(jax.random.PRNGKey(1), (3, 5, 7), dtype=jnp.float32) * 3.0
    y2 = jax.block_until_ready(mish(x2))
    assert y2.shape == x2.shape and y2.dtype == x2.dtype
    assert jnp.allclose(y2, mish_reference(x2), atol=5e-3, rtol=5e-3)

    # Ragged size with a lane-aligned bulk + small jnp tail.
    x3 = jax.random.normal(jax.random.PRNGKey(2), (3, 700), dtype=jnp.float32) * 3.0
    y3 = jax.block_until_ready(mish(x3))
    assert y3.shape == x3.shape and y3.dtype == x3.dtype
    assert jnp.allclose(y3, mish_reference(x3), atol=5e-3, rtol=5e-3)

    print("KERNEL_OK")
</pallas_src>

<mosaic_0001>
module attributes {stable_mosaic.version = 11 : i64} {
  func.func @_mish_kernel(%arg0: i32, %arg1: memref<1x2048xf32, #tpu.memory_space<vmem>>, %arg2: memref<1x2048xf32, #tpu.memory_space<vmem>>) attributes {dimension_semantics = [#tpu.dimension_semantics<parallel>], iteration_bounds = array<i64: 1>, scalar_prefetch = 0 : i64, scratch_operands = 0 : i64, tpu.core_type = #tpu.core_type<tc>, window_params = [{transform_indices = @transform_0, window_bounds = array<i64: 1, 2048>}, {transform_indices = @transform_1, window_bounds = array<i64: 1, 2048>}]} {
    %c0 = arith.constant 0 : index
    %c0_0 = arith.constant 0 : index
    %0 = vector.load %arg1[%c0, %c0_0] : memref<1x2048xf32, #tpu.memory_space<vmem>>, vector<1x2048xf32>
    %1 = math.absf %0 : vector<1x2048xf32>
    %cst = arith.constant 0.000000e+00 : f32
    %2 = vector.broadcast %cst : f32 to vector<1x2048xf32>
    %3 = arith.subf %2, %1 : vector<1x2048xf32>
    %4 = math.exp %3 : vector<1x2048xf32>
    %5 = arith.mulf %4, %4 : vector<1x2048xf32>
    %6 = arith.addf %4, %4 : vector<1x2048xf32>
    %cst_1 = arith.constant 0.000000e+00 : f32
    %7 = vector.broadcast %cst_1 : f32 to vector<1x2048xf32>
    %8 = arith.cmpf oge, %0, %7 : vector<1x2048xf32>
    %cst_2 = arith.constant 1.000000e+00 : f32
    %9 = vector.broadcast %cst_2 : f32 to vector<1x2048xf32>
    %10 = arith.select %8, %9, %5 : vector<1x2048xi1>, vector<1x2048xf32>
    %cst_3 = arith.constant 1.000000e+00 : f32
    %11 = vector.broadcast %cst_3 : f32 to vector<1x2048xf32>
    %12 = arith.select %8, %5, %11 : vector<1x2048xi1>, vector<1x2048xf32>
    %13 = arith.addf %10, %6 : vector<1x2048xf32>
    %14 = arith.addf %12, %12 : vector<1x2048xf32>
    %15 = arith.addf %13, %14 : vector<1x2048xf32>
    %16 = tpu.reciprocal %15 {approx = true} : vector<1x2048xf32> -> vector<1x2048xf32>
    %17 = arith.mulf %13, %16 : vector<1x2048xf32>
    %18 = arith.mulf %0, %17 : vector<1x2048xf32>
    %c0_4 = arith.constant 0 : index
    %c0_5 = arith.constant 0 : index
    %19 = vector.load %arg2[%c0_4, %c0_5] : memref<1x2048xf32, #tpu.memory_space<vmem>>, vector<1x2048xf32>
    tpu.vector_store %arg2[%c0_4, %c0_5], %18 {strides = array<i32>} : memref<1x2048xf32, #tpu.memory_space<vmem>>, vector<1x2048xf32>,
    return
  }
  func.func @transform_0(%arg0: i32) -> (i32, i32) {
    %c0_i32 = arith.constant 0 : i32
    %c0_i32_0 = arith.constant 0 : i32
    return %arg0, %c0_i32 : i32, i32
  }
  func.func @transform_1(%arg0: i32) -> (i32, i32) {
    %c0_i32 = arith.constant 0 : i32
    %c0_i32_0 = arith.constant 0 : i32
    return %arg0, %c0_i32 : i32, i32
  }
}

</mosaic_0001>

<llo_original>
// kernel: tpu_custom_call.1
$region0: #{tpu_custom_call.1}
  #allocation0 [shape = 'u32[]', space=smem, size = 0x4, offset = 0x4, fixed_abs, tag = 'smem constant byte address 0x4 - core index']
  #allocation1 [shape = 'u32[144,128]{1,0:T(1,128)}', space=vmem, size = 0x12000, scoped, tag = 'internal scratch']
  %s0 = inlined_call_operand.hbm [shape: f32[1,2048], index: 0, kind: input, shape index: {}]
  %s1 = inlined_call_operand.hbm [shape: f32[1,2048], index: 1, kind: output, shape index: {}]
  %s2 = sld [smem:[#allocation0]]
  $region18: #{tpu_custom_call.1} parent=0
    _
  %s4 = ssub.s32 1, %s2
  %s5 = scalar_select 0, %s4, %s2
  $region1: #{tpu_custom_call.1} parent=0
    #allocation2 [shape = 'u8[8192]{0}', space=vmem, size = 0x2000, scoped, tag = 'input window, operand 0, single buffered']
    #allocation3 [shape = 's32[1]{0}', space=sflag, size = 0x4, scoped, tag = 'scoped memory for tpu_custom_call.1']
    #allocation4 [shape = 's32[1]{0}', space=sflag, size = 0x4, scoped, tag = 'scoped memory for tpu_custom_call.1']
    #allocation5 [shape = 'u8[8192]{0}', space=vmem, size = 0x2000, scoped, tag = 'output window, operand 0, single buffered']
    %6 = vsyncpa [#allocation3], 0
    %7 = vsyncpa [#allocation4], 0
    // Predicated region
    $region2: #{tpu_custom_call.1} parent=1 // pred_check
      _
    $region3: #{tpu_custom_call.1} parent=1 // pred_check_branch
      %9 = sbr.rel (0) target = $region5
    $region4: #{tpu_custom_call.1} parent=1 // pred_region
      %s11 = ssub.s32 256, 256
      %12 = vsyncadd [#allocation3], %s11
      %s14 = sshll.u32 [#allocation2], 4
      %s15 = int_to_ptr.vmem [resolvable:$true] %s14
      %17 = dma.hbm_to_vmem [thread:$0]  %s0, 256, %s15, [#allocation3]
    $region5: #{tpu_custom_call.1} parent=1 // pred_fallthru
      _
    // Predicated region
    $region6: #{tpu_custom_call.1} parent=1 // pred_check
      _
    $region7: #{tpu_custom_call.1} parent=1 // pred_check_branch
      %19 = sbr.rel (0) target = $region9
    $region8: #{tpu_custom_call.1} parent=1 // pred_region
      %20 = dma.done [#allocation3], 256
    $region9: #{tpu_custom_call.1} parent=1 // pred_fallthru
      _
    %v21 = vld [vmem:[#allocation2] sm:$0xff]
    %v22 = vld [vmem:[#allocation2 + $0x8] sm:$0xff]
    %v23 = vand.u32 2147483647, %v21
    %v24 = vand.u32 2147483647, %v22
    %v25 = vsub.f32 0.0, %v23
    %v26 = vsub.f32 0.0, %v24
    %v27 = vmul.f32 %v25, 1.442695
    %v28 = vpow.pop %v27
    %v29 = vmul.f32 %v26, 1.442695
    %v30 = vpow.pop %v29
    %v31 = vmul.f32 %v28, %v28
    %v32 = vmul.f32 %v30, %v30
    %v33 = vadd.f32 %v28, %v28
    %v34 = vadd.f32 %v30, %v30
    %vm35 = vcmp.ge.f32.partialorder %v21, 0.0
    %vm36 = vcmp.ge.f32.partialorder %v22, 0.0
    %v37 = vsel %vm35, 1.0, %v31
    %v38 = vsel %vm36, 1.0, %v32
    %v39 = vsel %vm35, %v31, 1.0
    %v40 = vsel %vm36, %v32, 1.0
    %v41 = vadd.f32 %v37, %v33
    %v42 = vadd.f32 %v38, %v34
    %v43 = vadd.f32 %v39, %v39
    %v44 = vadd.f32 %v40, %v40
    %v45 = vadd.f32 %v41, %v43
    %v46 = vadd.f32 %v42, %v44
    %v47 = vrcp.pop %v45
    %v48 = vrcp.pop %v46
    %v49 = vmul.f32 %v41, %v47
    %v50 = vmul.f32 %v42, %v48
    %v51 = vmul.f32 %v21, %v49
    %v52 = vmul.f32 %v22, %v50
    %53 = vst [vmem:[#allocation5] sm:$0xff] %v51
    %54 = vst [vmem:[#allocation5 + $0x8] sm:$0xff] %v52
    // Predicated region
    $region10: #{tpu_custom_call.1} parent=1 // pred_check
      _
    $region11: #{tpu_custom_call.1} parent=1 // pred_check_branch
      %56 = sbr.rel (0) target = $region13
    $region12: #{tpu_custom_call.1} parent=1 // pred_region
      %s58 = ssub.s32 256, 256
      %59 = vsyncadd [#allocation4], %s58
      %s61 = sshll.u32 [#allocation5], 4
      %s62 = int_to_ptr.vmem [resolvable:$true] %s61
      %64 = dma.vmem_to_hbm [thread:$0]  %s62, 256, %s1, [#allocation4]
    $region13: #{tpu_custom_call.1} parent=1 // pred_fallthru
      _
    // Predicated region
    $region14: #{tpu_custom_call.1} parent=1 // pred_check
      _
    $region15: #{tpu_custom_call.1} parent=1 // pred_check_branch
      %66 = sbr.rel (0) target = $region17
    $region16: #{tpu_custom_call.1} parent=1 // pred_region
      %67 = dma.done [#allocation4], 256
    $region17: #{tpu_custom_call.1} parent=1 // pred_fallthru
      _
    %68 = vsyncpa [#allocation3], 1
    %69 = vsyncpa [#allocation4], 1

</llo_original>
